<compile_context>
chip_gen: v6e
topology: v6e:2x2x1
jax: 0.10.0
libtpu: 0.0.40
codegen_flags: <defaults>
</compile_context>

<pallas_src>
import jax
import jax.numpy as jnp
from jax import lax
from jax.experimental import pallas as pl
from jax.experimental.pallas import tpu as pltpu

HIDDEN = 8
_LANE = 128
_MAX_TILE_B = 8192      # rows of x per grid step (~4 MiB lane-padded VMEM buffer)
_MIN_GRID_STEPS = 4     # >=2 so v7x's two TensorCores both get work, >=2 to pipeline


def _round_up(x, m):
    return ((x + m - 1) // m) * m


def _default_tiling(B):
    """Return (tile_b, B_pad) with tile_b % 128 == 0 and tile_b dividing B_pad.

    Prefers an exact 128-block divisor of the lane-aligned batch (zero padding
    waste); falls back to a capped tile with small bounded padding when the
    best divisor is degenerate (e.g. prime block counts)."""
    b128 = _round_up(B, _LANE)
    n_blocks = b128 // _LANE
    cap = max(1, min(_MAX_TILE_B // _LANE, -(-n_blocks // _MIN_GRID_STEPS)))
    div = max(d for d in range(1, cap + 1) if n_blocks % d == 0)
    if div * 4 >= cap:                    # divisor close enough to the target size
        return div * _LANE, b128
    tile_b = cap * _LANE                  # else pad the batch a little instead
    return tile_b, _round_up(b128, tile_b)


def _mlp_kernel(x_ref, w1_ref, b1_ref, w2_ref, b2_ref, wo_ref, bo_ref, o_ref):
    # x tile arrives in native batch-major layout [tile_b, N]; every matmul
    # result is a lane-dense [8, tile_b] / [1, tile_b] slab.
    x = x_ref[...]                                                     # [tb, N]
    w2 = w2_ref[...]                                                   # [8, 8]
    b2 = b2_ref[...]                                                   # [8, 1]

    # a1 = relu(W1 @ x^T + b1): contract N on the last dim of BOTH operands so
    # the transpose is folded into the MXU feed (no explicit XLU transpose).
    a1 = lax.dot_general(w1_ref[...], x, (((1,), (1,)), ((), ())),
                         preferred_element_type=jnp.float32) + b1_ref[...]
    a1 = jnp.maximum(a1, 0.0)                                          # [8, tb]

    a2 = jnp.maximum(
        jnp.dot(w2, a1, preferred_element_type=jnp.float32) + b2, 0.0)  # [8, tb]

    # NOTE: the PyTorch reference forward reuses hidden_linear2 here (and never
    # touches hidden_linear3). This is intentional -- do NOT "fix" it to w3.
    a3 = jnp.maximum(
        jnp.dot(w2, a2, preferred_element_type=jnp.float32) + b2, 0.0)  # [8, tb]

    y = jnp.dot(wo_ref[...], a3, preferred_element_type=jnp.float32) + bo_ref[...]
    o_ref[...] = y.astype(o_ref.dtype)                                  # [1, tb]


def mlp_forward(x, params, *, tile_b=None):
    """x: [B, N] float32 (PyTorch-style batch-major input). Returns [B, 1]."""
    B, N = x.shape
    if tile_b is None:
        tile_b, B_pad = _default_tiling(B)
    else:
        assert tile_b % _LANE == 0, "tile_b must be lane-aligned (multiple of 128)"
        B_pad = _round_up(B, tile_b)

    # Pad only the batch dim (no host-side transpose, no extra HBM pass over x).
    x_pad = x if B_pad == B else jnp.pad(x, ((0, B_pad - B), (0, 0)))

    w1, b1 = params["w1"], params["b1"]      # [8, N], [8, 1]  (PyTorch layout)
    w2, b2 = params["w2"], params["b2"]      # [8, 8], [8, 1]
    wo, bo = params["wo"], params["bo"]      # [1, 8], [1, 1]

    grid = (B_pad // tile_b,)

    # Constant index_map -> weights/biases are VMEM-resident, fetched once.
    resident = lambda a: pl.BlockSpec(a.shape, lambda i: (0, 0))

    param_bytes = sum(int(p.size) * p.dtype.itemsize for p in (w1, b1, w2, b2, wo, bo))
    cost = pl.CostEstimate(
        flops=2 * B_pad * (N * HIDDEN + 2 * HIDDEN * HIDDEN + HIDDEN),
        transcendentals=0,
        bytes_accessed=B_pad * N * 4 + B_pad * 4 + param_bytes,
    )

    y_t = pl.pallas_call(
        _mlp_kernel,
        out_shape=jax.ShapeDtypeStruct((1, B_pad), jnp.float32),
        grid_spec=pltpu.PrefetchScalarGridSpec(
            num_scalar_prefetch=0,
            grid=grid,
            in_specs=[
                # Native [tile_b, N] x tile: last dim (N) equals the full array
                # dim, second-to-last is a multiple of 128 -> legal BlockSpec.
                pl.BlockSpec((tile_b, N), lambda i: (i, 0)),
                resident(w1), resident(b1),
                resident(w2), resident(b2),
                resident(wo), resident(bo),
            ],
            out_specs=pl.BlockSpec((1, tile_b), lambda i: (0, i)),  # lane-dense out
        ),
        compiler_params=pltpu.CompilerParams(
            dimension_semantics=("parallel",),
            # Headroom for the lane-padded [tile_b, 32] double-buffered input on
            # v5e (16 MiB default scoped VMEM); well within physical VMEM everywhere.
            vmem_limit_bytes=32 * 1024 * 1024,
        ),
        cost_estimate=cost,
    )(x_pad, w1, b1, w2, b2, wo, bo)

    # Back to PyTorch output shape [B, 1]; drop batch padding.
    return y_t[0, :B].reshape(B, 1)


def init_params(key, n):
    """PyTorch-layout params with nn.Linear-style U(-1/sqrt(fan_in), 1/sqrt(fan_in)) init."""
    ks = jax.random.split(key, 8)

    def lin(kw, kb, fan_in, fan_out):
        bound = 1.0 / jnp.sqrt(jnp.float32(fan_in))
        w = jax.random.uniform(kw, (fan_out, fan_in), jnp.float32, -bound, bound)
        b = jax.random.uniform(kb, (fan_out, 1), jnp.float32, -bound, bound)
        return w, b

    w1, b1 = lin(ks[0], ks[1], n, HIDDEN)
    w2, b2 = lin(ks[2], ks[3], HIDDEN, HIDDEN)
    w3, b3 = lin(ks[4], ks[5], HIDDEN, HIDDEN)   # created for parity; unused in forward
    wo, bo = lin(ks[6], ks[7], HIDDEN, 1)
    return dict(w1=w1, b1=b1, w2=w2, b2=b2, w3=w3, b3=b3, wo=wo, bo=bo)


def reference_forward(x, p):
    """Pure-JAX reference in the standard [B, N] layout (PyTorch-layout weights)."""
    a1 = jnp.maximum(x @ p["w1"].T + p["b1"].T, 0.0)
    a2 = jnp.maximum(a1 @ p["w2"].T + p["b2"].T, 0.0)
    a3 = jnp.maximum(a2 @ p["w2"].T + p["b2"].T, 0.0)   # linear2 reused, as in the model
    return a3 @ p["wo"].T + p["bo"].T


if __name__ == "__main__":
    key = jax.random.PRNGKey(0)
    k_x, k_p, k_x2 = jax.random.split(key, 3)

    # Small, deterministic shapes consistent with the module.
    B, N = 8, 32
    x = jax.random.normal(k_x, (B, N), jnp.float32)
    params = init_params(k_p, N)

    y = jax.block_until_ready(mlp_forward(x, params))
    y_ref = reference_forward(x, params)
    assert y.shape == (B, 1)
    assert jnp.allclose(y, y_ref, atol=1e-5, rtol=1e-5), "mismatch vs pure-JAX reference"

    # Exercise a multi-step grid (pipelined x stream) + ragged batch padding,
    # both with the auto-chosen tiling and with an explicit tile size.
    B2 = 300
    x2 = jax.random.normal(k_x2, (B2, N), jnp.float32)
    y2 = jax.block_until_ready(mlp_forward(x2, params))
    y2b = jax.block_until_ready(mlp_forward(x2, params, tile_b=128))
    y2_ref = reference_forward(x2, params)
    assert y2.shape == (B2, 1)
    assert jnp.allclose(y2, y2_ref, atol=1e-5, rtol=1e-5), "mismatch (auto tiling)"
    assert jnp.allclose(y2b, y2_ref, atol=1e-5, rtol=1e-5), "mismatch (explicit tiling)"

    print("KERNEL_OK")
</pallas_src>

<mosaic_0001>
module attributes {stable_mosaic.version = 11 : i64} {
  func.func @_mlp_kernel(%arg0: i32, %arg1: memref<128x32xf32, #tpu.memory_space<vmem>>, %arg2: memref<8x32xf32, #tpu.memory_space<vmem>>, %arg3: memref<8x1xf32, #tpu.memory_space<vmem>>, %arg4: memref<8x8xf32, #tpu.memory_space<vmem>>, %arg5: memref<8x1xf32, #tpu.memory_space<vmem>>, %arg6: memref<1x8xf32, #tpu.memory_space<vmem>>, %arg7: memref<1x1xf32, #tpu.memory_space<vmem>>, %arg8: memref<1x128xf32, #tpu.memory_space<vmem>>) attributes {dimension_semantics = [#tpu.dimension_semantics<parallel>], iteration_bounds = array<i64: 1>, scalar_prefetch = 0 : i64, scratch_operands = 0 : i64, tpu.core_type = #tpu.core_type<tc>, window_params = [{transform_indices = @transform_0, window_bounds = array<i64: 128, 32>}, {pipeline_mode = #tpu.pipeline_mode<synchronous>, transform_indices = @transform_1, window_bounds = array<i64: 8, 32>}, {pipeline_mode = #tpu.pipeline_mode<synchronous>, transform_indices = @transform_2, window_bounds = array<i64: 8, 1>}, {pipeline_mode = #tpu.pipeline_mode<synchronous>, transform_indices = @transform_3, window_bounds = array<i64: 8, 8>}, {pipeline_mode = #tpu.pipeline_mode<synchronous>, transform_indices = @transform_4, window_bounds = array<i64: 8, 1>}, {pipeline_mode = #tpu.pipeline_mode<synchronous>, transform_indices = @transform_5, window_bounds = array<i64: 1, 8>}, {pipeline_mode = #tpu.pipeline_mode<synchronous>, transform_indices = @transform_6, window_bounds = array<i64: 1, 1>}, {transform_indices = @transform_7, window_bounds = array<i64: 1, 128>}]} {
    %c0 = arith.constant 0 : index
    %c0_0 = arith.constant 0 : index
    %0 = vector.load %arg1[%c0, %c0_0] : memref<128x32xf32, #tpu.memory_space<vmem>>, vector<128x32xf32>
    %c0_1 = arith.constant 0 : index
    %c0_2 = arith.constant 0 : index
    %1 = vector.load %arg4[%c0_1, %c0_2] : memref<8x8xf32, #tpu.memory_space<vmem>>, vector<8x8xf32>
    %c0_3 = arith.constant 0 : index
    %c0_4 = arith.constant 0 : index
    %2 = vector.load %arg5[%c0_3, %c0_4] : memref<8x1xf32, #tpu.memory_space<vmem>>, vector<8x1xf32>
    %c0_5 = arith.constant 0 : index
    %c0_6 = arith.constant 0 : index
    %3 = vector.load %arg2[%c0_5, %c0_6] : memref<8x32xf32, #tpu.memory_space<vmem>>, vector<8x32xf32>
    %cst = arith.constant dense<0.000000e+00> : vector<8x128xf32>
    %4 = tpu.matmul %3, %0, %cst {dimension_numbers = #tpu.dot_dimension_numbers<[1], [1], [0], [0], [0, 0, 1, 0], [], []>} : vector<8x32xf32>, vector<128x32xf32>, vector<8x128xf32> -> vector<8x128xf32>
    %c0_7 = arith.constant 0 : index
    %c0_8 = arith.constant 0 : index
    %5 = vector.load %arg3[%c0_7, %c0_8] : memref<8x1xf32, #tpu.memory_space<vmem>>, vector<8x1xf32>
    %6 = vector.broadcast %5 : vector<8x1xf32> to vector<8x128xf32>
    %7 = arith.addf %4, %6 : vector<8x128xf32>
    %cst_9 = arith.constant 0.000000e+00 : f32
    %8 = vector.broadcast %cst_9 : f32 to vector<8x128xf32>
    %9 = arith.maximumf %7, %8 : vector<8x128xf32>
    %cst_10 = arith.constant dense<0.000000e+00> : vector<8x128xf32>
    %10 = tpu.matmul %1, %9, %cst_10 {dimension_numbers = #tpu.dot_dimension_numbers<[1], [0], [0], [1], [0, 0, 1, 1], [], []>} : vector<8x8xf32>, vector<8x128xf32>, vector<8x128xf32> -> vector<8x128xf32>
    %11 = vector.broadcast %2 : vector<8x1xf32> to vector<8x128xf32>
    %12 = arith.addf %10, %11 : vector<8x128xf32>
    %cst_11 = arith.constant 0.000000e+00 : f32
    %13 = vector.broadcast %cst_11 : f32 to vector<8x128xf32>
    %14 = arith.maximumf %12, %13 : vector<8x128xf32>
    %cst_12 = arith.constant dense<0.000000e+00> : vector<8x128xf32>
    %15 = tpu.matmul %1, %14, %cst_12 {dimension_numbers = #tpu.dot_dimension_numbers<[1], [0], [0], [1], [0, 0, 1, 1], [], []>} : vector<8x8xf32>, vector<8x128xf32>, vector<8x128xf32> -> vector<8x128xf32>
    %16 = vector.broadcast %2 : vector<8x1xf32> to vector<8x128xf32>
    %17 = arith.addf %15, %16 : vector<8x128xf32>
    %cst_13 = arith.constant 0.000000e+00 : f32
    %18 = vector.broadcast %cst_13 : f32 to vector<8x128xf32>
    %19 = arith.maximumf %17, %18 : vector<8x128xf32>
    %c0_14 = arith.constant 0 : index
    %c0_15 = arith.constant 0 : index
    %20 = vector.load %arg6[%c0_14, %c0_15] : memref<1x8xf32, #tpu.memory_space<vmem>>, vector<1x8xf32>
    %cst_16 = arith.constant dense<0.000000e+00> : vector<1x128xf32>
    %21 = tpu.matmul %20, %19, %cst_16 {dimension_numbers = #tpu.dot_dimension_numbers<[1], [0], [0], [1], [0, 0, 1, 1], [], []>} : vector<1x8xf32>, vector<8x128xf32>, vector<1x128xf32> -> vector<1x128xf32>
    %c0_17 = arith.constant 0 : index
    %c0_18 = arith.constant 0 : index
    %22 = vector.load %arg7[%c0_17, %c0_18] : memref<1x1xf32, #tpu.memory_space<vmem>>, vector<1x1xf32>
    %23 = vector.broadcast %22 : vector<1x1xf32> to vector<1x128xf32>
    %24 = arith.addf %21, %23 : vector<1x128xf32>
    %c0_19 = arith.constant 0 : index
    %c0_20 = arith.constant 0 : index
    %25 = vector.load %arg8[%c0_19, %c0_20] : memref<1x128xf32, #tpu.memory_space<vmem>>, vector<1x128xf32>
    tpu.vector_store %arg8[%c0_19, %c0_20], %24 {strides = array<i32>} : memref<1x128xf32, #tpu.memory_space<vmem>>, vector<1x128xf32>,
    return
  }
  func.func @transform_0(%arg0: i32) -> (i32, i32) {
    %c0_i32 = arith.constant 0 : i32
    %c0_i32_0 = arith.constant 0 : i32
    return %arg0, %c0_i32 : i32, i32
  }
  func.func @transform_1(%arg0: i32) -> (i32, i32) {
    %c0_i32 = arith.constant 0 : i32
    %c0_i32_0 = arith.constant 0 : i32
    %c0_i32_1 = arith.constant 0 : i32
    return %c0_i32, %c0_i32_0 : i32, i32
  }
  func.func @transform_2(%arg0: i32) -> (i32, i32) {
    %c0_i32 = arith.constant 0 : i32
    %c0_i32_0 = arith.constant 0 : i32
    %c0_i32_1 = arith.constant 0 : i32
    return %c0_i32, %c0_i32_0 : i32, i32
  }
  func.func @transform_3(%arg0: i32) -> (i32, i32) {
    %c0_i32 = arith.constant 0 : i32
    %c0_i32_0 = arith.constant 0 : i32
    %c0_i32_1 = arith.constant 0 : i32
    return %c0_i32, %c0_i32_0 : i32, i32
  }
  func.func @transform_4(%arg0: i32) -> (i32, i32) {
    %c0_i32 = arith.constant 0 : i32
    %c0_i32_0 = arith.constant 0 : i32
    %c0_i32_1 = arith.constant 0 : i32
    return %c0_i32, %c0_i32_0 : i32, i32
  }
  func.func @transform_5(%arg0: i32) -> (i32, i32) {
    %c0_i32 = arith.constant 0 : i32
    %c0_i32_0 = arith.constant 0 : i32
    %c0_i32_1 = arith.constant 0 : i32
    return %c0_i32, %c0_i32_0 : i32, i32
  }
  func.func @transform_6(%arg0: i32) -> (i32, i32) {
    %c0_i32 = arith.constant 0 : i32
    %c0_i32_0 = arith.constant 0 : i32
    %c0_i32_1 = arith.constant 0 : i32
    return %c0_i32, %c0_i32_0 : i32, i32
  }
  func.func @transform_7(%arg0: i32) -> (i32, i32) {
    %c0_i32 = arith.constant 0 : i32
    %c0_i32_0 = arith.constant 0 : i32
    return %c0_i32, %arg0 : i32, i32
  }
}

</mosaic_0001>

<llo_original>
// kernel: tpu_custom_call.1
$region0: #{tpu_custom_call.1}
  #allocation0 [shape = 'u32[]', space=smem, size = 0x4, offset = 0x4, fixed_abs, tag = 'smem constant byte address 0x4 - core index']
  #allocation1 [shape = 'u32[144,128]{1,0:T(1,128)}', space=vmem, size = 0x12000, scoped, tag = 'internal scratch']
  #allocation2 [shape = 'f32[1,1]{1,0:T(1,128)S(1)}', space=vmem, size = 0x200, scoped, tag = 'scoped memory for tpu_custom_call.1']
  %s0 = inlined_call_operand.vmem [shape: f32[128,32], index: 0, kind: input, shape index: {}]
  %s1 = inlined_call_operand.vmem [shape: f32[8,32], index: 1, kind: input, shape index: {}]
  %s2 = inlined_call_operand.vmem [shape: f32[8,1], index: 2, kind: input, shape index: {}]
  %s3 = inlined_call_operand.vmem [shape: f32[8,8], index: 3, kind: input, shape index: {}]
  %s4 = inlined_call_operand.vmem [shape: f32[8,1], index: 4, kind: input, shape index: {}]
  %s5 = inlined_call_operand.vmem [shape: f32[1,8], index: 5, kind: input, shape index: {}]
  %s6 = inlined_call_operand.<no memory space> [shape: f32[1,1], index: 6, kind: input, shape index: {}]
  %s7 = inlined_call_operand.hbm [shape: f32[1,128], index: 7, kind: output, shape index: {}]
  %s8 = sld [smem:[#allocation0]]
  $region38: #{tpu_custom_call.1} parent=0
    _
  %s10 = ssub.s32 1, %s8
  %s11 = scalar_select 0, %s10, %s8
  %v12 = vstv %s6
  %13 = vst [vmem:[#allocation2] sm:$0x1] %v12
  $region1: #{tpu_custom_call.1} parent=0
    #allocation3 [shape = 'u8[512]{0}', space=vmem, size = 0x400, scoped, tag = 'output window, operand 0, single buffered']
    #allocation4 [shape = 's32[1]{0}', space=sflag, size = 0x4, scoped, tag = 'scoped memory for tpu_custom_call.1']
    %14 = vsyncpa [#allocation4], 0
    // Predicated region
    $region2: #{tpu_custom_call.1} parent=1 // pred_check
      _
    $region3: #{tpu_custom_call.1} parent=1 // pred_check_branch
      %16 = sbr.rel (0) target = $region5
    $region4: #{tpu_custom_call.1} parent=1 // pred_region
      _
    $region5: #{tpu_custom_call.1} parent=1 // pred_fallthru
      _
    // Predicated region
    $region6: #{tpu_custom_call.1} parent=1 // pred_check
      _
    $region7: #{tpu_custom_call.1} parent=1 // pred_check_branch
      %18 = sbr.rel (0) target = $region9
    $region8: #{tpu_custom_call.1} parent=1 // pred_region
      _
    $region9: #{tpu_custom_call.1} parent=1 // pred_fallthru
      _
    // Predicated region
    $region10: #{tpu_custom_call.1} parent=1 // pred_check
      _
    $region11: #{tpu_custom_call.1} parent=1 // pred_check_branch
      %20 = sbr.rel (0) target = $region13
    $region12: #{tpu_custom_call.1} parent=1 // pred_region
      _
    $region13: #{tpu_custom_call.1} parent=1 // pred_fallthru
      _
    // Predicated region
    $region14: #{tpu_custom_call.1} parent=1 // pred_check
      _
    $region15: #{tpu_custom_call.1} parent=1 // pred_check_branch
      %22 = sbr.rel (0) target = $region17
    $region16: #{tpu_custom_call.1} parent=1 // pred_region
      _
    $region17: #{tpu_custom_call.1} parent=1 // pred_fallthru
      _
    // Predicated region
    $region18: #{tpu_custom_call.1} parent=1 // pred_check
      _
    $region19: #{tpu_custom_call.1} parent=1 // pred_check_branch
      %24 = sbr.rel (0) target = $region21
    $region20: #{tpu_custom_call.1} parent=1 // pred_region
      _
    $region21: #{tpu_custom_call.1} parent=1 // pred_fallthru
      _
    // Predicated region
    $region22: #{tpu_custom_call.1} parent=1 // pred_check
      _
    $region23: #{tpu_custom_call.1} parent=1 // pred_check_branch
      %26 = sbr.rel (0) target = $region25
    $region24: #{tpu_custom_call.1} parent=1 // pred_region
      _
    $region25: #{tpu_custom_call.1} parent=1 // pred_fallthru
      _
    // Predicated region
    $region26: #{tpu_custom_call.1} parent=1 // pred_check
      _
    $region27: #{tpu_custom_call.1} parent=1 // pred_check_branch
      %28 = sbr.rel (0) target = $region29
    $region28: #{tpu_custom_call.1} parent=1 // pred_region
      _
    $region29: #{tpu_custom_call.1} parent=1 // pred_fallthru
      _
    %v29 = vld [vmem:[%s0] sm:$0xff]
    %v30 = vld [vmem:[%s0 + $0x8] sm:$0xff]
    %v31 = vld [vmem:[%s0 + $0x10] sm:$0xff]
    %v32 = vld [vmem:[%s0 + $0x18] sm:$0xff]
    %v33 = vld [vmem:[%s0 + $0x20] sm:$0xff]
    %v34 = vld [vmem:[%s0 + $0x28] sm:$0xff]
    %v35 = vld [vmem:[%s0 + $0x30] sm:$0xff]
    %v36 = vld [vmem:[%s0 + $0x38] sm:$0xff]
    %v37 = vld [vmem:[%s0 + $0x40] sm:$0xff]
    %v38 = vld [vmem:[%s0 + $0x48] sm:$0xff]
    %v39 = vld [vmem:[%s0 + $0x50] sm:$0xff]
    %v40 = vld [vmem:[%s0 + $0x58] sm:$0xff]
    %v41 = vld [vmem:[%s0 + $0x60] sm:$0xff]
    %v42 = vld [vmem:[%s0 + $0x68] sm:$0xff]
    %v43 = vld [vmem:[%s0 + $0x70] sm:$0xff]
    %v44 = vld [vmem:[%s0 + $0x78] sm:$0xff]
    %v45 = vld [vmem:[%s3] sm:$0xff]
    %v46 = vld [vmem:[%s4] sm:$0xff]
    %v47 = vld [vmem:[%s1] sm:$0xff]
    %v48 = vld [vmem:[%s2] sm:$0xff]
    %50 = vset.pattern.permute.xlu0 0
    %51 = vperm.xlu0 %50, %v48
    %v52 = vpop.permute.xlu0 %51
    %vm54 = vcmask 261120
    %v56 = vsel %vm54, %v47, 0
    %v59 = vsel %vm54, %v29, 0
    %v62 = vsel %vm54, %v30, 0
    %v65 = vsel %vm54, %v31, 0
    %v68 = vsel %vm54, %v32, 0
    %v71 = vsel %vm54, %v33, 0
    %v74 = vsel %vm54, %v34, 0
    %v77 = vsel %vm54, %v35, 0
    %v80 = vsel %vm54, %v36, 0
    %v83 = vsel %vm54, %v37, 0
    %v86 = vsel %vm54, %v38, 0
    %v89 = vsel %vm54, %v39, 0
    %v92 = vsel %vm54, %v40, 0
    %v95 = vsel %vm54, %v41, 0
    %v98 = vsel %vm54, %v42, 0
    %v101 = vsel %vm54, %v43, 0
    %v104 = vsel %vm54, %v44, 0
    %106 = vmatprep.subr.mxu0 0.0
    %107 = vmatpush1.xpose.msra.mxu0 %v104
    %108 = vmatprep.subr.mxu0 0.0
    %109 = vmatpush1.xpose.msra.mxu0 %v101
    %110 = vmatprep.subr.mxu0 0.0
    %111 = vmatpush1.xpose.msra.mxu0 %v98
    %112 = vmatprep.subr.mxu0 0.0
    %113 = vmatpush1.xpose.msra.mxu0 %v95
    %114 = vmatprep.subr.mxu0 0.0
    %115 = vmatpush1.xpose.msra.mxu0 %v92
    %116 = vmatprep.subr.mxu0 0.0
    %117 = vmatpush1.xpose.msra.mxu0 %v89
    %118 = vmatprep.subr.mxu0 0.0
    %119 = vmatpush1.xpose.msra.mxu0 %v86
    %120 = vmatprep.subr.mxu0 0.0
    %121 = vmatpush1.xpose.msra.mxu0 %v83
    %122 = vmatprep.subr.mxu0 0.0
    %123 = vmatpush1.xpose.msra.mxu0 %v80
    %124 = vmatprep.subr.mxu0 0.0
    %125 = vmatpush1.xpose.msra.mxu0 %v77
    %126 = vmatprep.subr.mxu0 0.0
    %127 = vmatpush1.xpose.msra.mxu0 %v74
    %128 = vmatprep.subr.mxu0 0.0
    %129 = vmatpush1.xpose.msra.mxu0 %v71
    %130 = vmatprep.subr.mxu0 0.0
    %131 = vmatpush1.xpose.msra.mxu0 %v68
    %132 = vmatprep.subr.mxu0 0.0
    %133 = vmatpush1.xpose.msra.mxu0 %v65
    %134 = vmatprep.subr.mxu0 0.0
    %135 = vmatpush1.xpose.msra.mxu0 %v62
    %136 = vmatprep.subr.mxu0 0.0
    %137 = vmatpush1.xpose.msra.mxu0 %v59
    %138 = vmatprep.subr.mxu0 0.0
    %139 = vmatpush2.xpose.msra.mxu0 0.0
    %140 = vmatprep.subr.mxu0 0.0
    %141 = vmatpush2.xpose.msra.mxu0 0.0
    %142 = vmatprep.subr.mxu0 0.0
    %143 = vmatpush2.xpose.msra.mxu0 0.0
    %144 = vmatprep.subr.mxu0 0.0
    %145 = vmatpush2.xpose.msra.mxu0 0.0
    %146 = vmatprep.subr.mxu0 0.0
    %147 = vmatpush2.xpose.msra.mxu0 0.0
    %148 = vmatprep.subr.mxu0 0.0
    %149 = vmatpush2.xpose.msra.mxu0 0.0
    %150 = vmatprep.subr.mxu0 0.0
    %151 = vmatpush2.xpose.msra.mxu0 0.0
    %152 = vmatprep.subr.mxu0 0.0
    %153 = vmatpush2.xpose.msra.mxu0 0.0
    %154 = vmatprep.subr.mxu0 0.0
    %155 = vmatpush2.xpose.msra.mxu0 0.0
    %156 = vmatprep.subr.mxu0 0.0
    %157 = vmatpush2.xpose.msra.mxu0 0.0
    %158 = vmatprep.subr.mxu0 0.0
    %159 = vmatpush2.xpose.msra.mxu0 0.0
    %160 = vmatprep.subr.mxu0 0.0
    %161 = vmatpush2.xpose.msra.mxu0 0.0
    %162 = vmatprep.subr.mxu0 0.0
    %163 = vmatpush2.xpose.msra.mxu0 0.0
    %164 = vmatprep.subr.mxu0 0.0
    %165 = vmatpush2.xpose.msra.mxu0 0.0
    %166 = vmatprep.subr.mxu0 0.0
    %167 = vmatpush2.xpose.msra.mxu0 0.0
    %168 = vmatprep.subr.mxu0 0.0
    %169 = vmatpush2.xpose.msra.mxu0 0.0
    %170 = vmatprep.mubr.f32.mxu0 0.0
    %171 = vmatmul.mubr.f32.gmra.mxu0 %v56
    %v172 = vpop.f32.mrf.mxu0
    %v173 = vadd.f32 %v52, %v172
    %v174 = vpop.f32.mrf.mxu0
    %175 = vdwg.mxu0
    %v176 = vmax.f32 %v173, 0.0
    %178 = vset.pattern.permute.xlu0 0
    %179 = vperm.xlu0 %178, %v46
    %v180 = vpop.permute.xlu0 %179
    %vm182 = vcmask 64512
    %v184 = vsel %vm182, %v45, 0
    %186 = vmatprep.subr.mxu0 0.0
    %187 = vmatpush1.msra.mxu0 0.0
    %188 = vmatprep.subr.mxu0 0.0
    %189 = vmatpush1.msra.mxu0 0.0
    %190 = vmatprep.subr.mxu0 0.0
    %191 = vmatpush1.msra.mxu0 0.0
    %192 = vmatprep.subr.mxu0 0.0
    %193 = vmatpush1.msra.mxu0 0.0
    %194 = vmatprep.subr.mxu0 0.0
    %195 = vmatpush1.msra.mxu0 0.0
    %196 = vmatprep.subr.mxu0 0.0
    %197 = vmatpush1.msra.mxu0 0.0
    %198 = vmatprep.subr.mxu0 0.0
    %199 = vmatpush1.msra.mxu0 0.0
    %200 = vmatprep.subr.mxu0 0.0
    %201 = vmatpush1.msra.mxu0 0.0
    %202 = vmatprep.subr.mxu0 0.0
    %203 = vmatpush1.msra.mxu0 0.0
    %204 = vmatprep.subr.mxu0 0.0
    %205 = vmatpush1.msra.mxu0 0.0
    %206 = vmatprep.subr.mxu0 0.0
    %207 = vmatpush1.msra.mxu0 0.0
    %208 = vmatprep.subr.mxu0 0.0
    %209 = vmatpush1.msra.mxu0 0.0
    %210 = vmatprep.subr.mxu0 0.0
    %211 = vmatpush1.msra.mxu0 0.0
    %212 = vmatprep.subr.mxu0 0.0
    %213 = vmatpush1.msra.mxu0 0.0
    %214 = vmatprep.subr.mxu0 0.0
    %215 = vmatpush1.msra.mxu0 0.0
    %216 = vmatprep.subr.mxu0 0.0
    %217 = vmatpush1.msra.mxu0 %v176
    %218 = vmatprep.subr.mxu0 0.0
    %219 = vmatpush2.msra.mxu0 0.0
    %220 = vmatprep.subr.mxu0 0.0
    %221 = vmatpush2.msra.mxu0 0.0
    %222 = vmatprep.subr.mxu0 0.0
    %223 = vmatpush2.msra.mxu0 0.0
    %224 = vmatprep.subr.mxu0 0.0
    %225 = vmatpush2.msra.mxu0 0.0
    %226 = vmatprep.subr.mxu0 0.0
    %227 = vmatpush2.msra.mxu0 0.0
    %228 = vmatprep.subr.mxu0 0.0
    %229 = vmatpush2.msra.mxu0 0.0
    %230 = vmatprep.subr.mxu0 0.0
    %231 = vmatpush2.msra.mxu0 0.0
    %232 = vmatprep.subr.mxu0 0.0
    %233 = vmatpush2.msra.mxu0 0.0
    %234 = vmatprep.subr.mxu0 0.0
    %235 = vmatpush2.msra.mxu0 0.0
    %236 = vmatprep.subr.mxu0 0.0
    %237 = vmatpush2.msra.mxu0 0.0
    %238 = vmatprep.subr.mxu0 0.0
    %239 = vmatpush2.msra.mxu0 0.0
    %240 = vmatprep.subr.mxu0 0.0
    %241 = vmatpush2.msra.mxu0 0.0
    %242 = vmatprep.subr.mxu0 0.0
    %243 = vmatpush2.msra.mxu0 0.0
    %244 = vmatprep.subr.mxu0 0.0
    %245 = vmatpush2.msra.mxu0 0.0
    %246 = vmatprep.subr.mxu0 0.0
    %247 = vmatpush2.msra.mxu0 0.0
    %248 = vmatprep.subr.mxu0 0.0
    %249 = vmatpush2.msra.mxu0 0.0
    %250 = vmatprep.mubr.f32.mxu0 0.0
    %251 = vmatmul.mubr.f32.gmra.mxu0 %v184
    %v252 = vpop.f32.mrf.mxu0
    %v253 = vadd.f32 %v180, %v252
    %v254 = vpop.f32.mrf.mxu0
    %255 = vdwg.mxu0
    %v256 = vmax.f32 %v253, 0.0
    %257 = vmatprep.subr.mxu0 0.0
    %258 = vmatpush1.msra.mxu0 0.0
    %259 = vmatprep.subr.mxu0 0.0
    %260 = vmatpush1.msra.mxu0 0.0
    %261 = vmatprep.subr.mxu0 0.0
    %262 = vmatpush1.msra.mxu0 0.0
    %263 = vmatprep.subr.mxu0 0.0
    %264 = vmatpush1.msra.mxu0 0.0
    %265 = vmatprep.subr.mxu0 0.0
    %266 = vmatpush1.msra.mxu0 0.0
    %267 = vmatprep.subr.mxu0 0.0
    %268 = vmatpush1.msra.mxu0 0.0
    %269 = vmatprep.subr.mxu0 0.0
    %270 = vmatpush1.msra.mxu0 0.0
    %271 = vmatprep.subr.mxu0 0.0
    %272 = vmatpush1.msra.mxu0 0.0
    %273 = vmatprep.subr.mxu0 0.0
    %274 = vmatpush1.msra.mxu0 0.0
    %275 = vmatprep.subr.mxu0 0.0
    %276 = vmatpush1.msra.mxu0 0.0
    %277 = vmatprep.subr.mxu0 0.0
    %278 = vmatpush1.msra.mxu0 0.0
    %279 = vmatprep.subr.mxu0 0.0
    %280 = vmatpush1.msra.mxu0 0.0
    %281 = vmatprep.subr.mxu0 0.0
    %282 = vmatpush1.msra.mxu0 0.0
    %283 = vmatprep.subr.mxu0 0.0
    %284 = vmatpush1.msra.mxu0 0.0
    %285 = vmatprep.subr.mxu0 0.0
    %286 = vmatpush1.msra.mxu0 0.0
    %287 = vmatprep.subr.mxu0 0.0
    %288 = vmatpush1.msra.mxu0 %v256
    %289 = vmatprep.subr.mxu0 0.0
    %290 = vmatpush2.msra.mxu0 0.0
    %291 = vmatprep.subr.mxu0 0.0
    %292 = vmatpush2.msra.mxu0 0.0
    %293 = vmatprep.subr.mxu0 0.0
    %294 = vmatpush2.msra.mxu0 0.0
    %295 = vmatprep.subr.mxu0 0.0
    %296 = vmatpush2.msra.mxu0 0.0
    %297 = vmatprep.subr.mxu0 0.0
    %298 = vmatpush2.msra.mxu0 0.0
    %299 = vmatprep.subr.mxu0 0.0
    %300 = vmatpush2.msra.mxu0 0.0
    %301 = vmatprep.subr.mxu0 0.0
    %302 = vmatpush2.msra.mxu0 0.0
    %303 = vmatprep.subr.mxu0 0.0
    %304 = vmatpush2.msra.mxu0 0.0
    %305 = vmatprep.subr.mxu0 0.0
    %306 = vmatpush2.msra.mxu0 0.0
    %307 = vmatprep.subr.mxu0 0.0
    %308 = vmatpush2.msra.mxu0 0.0
    %309 = vmatprep.subr.mxu0 0.0
    %310 = vmatpush2.msra.mxu0 0.0
    %311 = vmatprep.subr.mxu0 0.0
    %312 = vmatpush2.msra.mxu0 0.0
    %313 = vmatprep.subr.mxu0 0.0
    %314 = vmatpush2.msra.mxu0 0.0
    %315 = vmatprep.subr.mxu0 0.0
    %316 = vmatpush2.msra.mxu0 0.0
    %317 = vmatprep.subr.mxu0 0.0
    %318 = vmatpush2.msra.mxu0 0.0
    %319 = vmatprep.subr.mxu0 0.0
    %320 = vmatpush2.msra.mxu0 0.0
    %321 = vmatprep.mubr.f32.mxu0 0.0
    %322 = vmatmul.mubr.f32.gmra.mxu0 %v184
    %v323 = vpop.f32.mrf.mxu0
    %v324 = vadd.f32 %v180, %v323
    %v325 = vpop.f32.mrf.mxu0
    %326 = vdwg.mxu0
    %v327 = vmax.f32 %v324, 0.0
    %v328 = vld [vmem:[%s5] sm:$0x1]
    %v329 = vld [vmem:[#allocation2] sm:$0x1]
    %331 = vset.pattern.permute.xlu0 0
    %332 = vperm.xlu0 %331, %v329
    %v333 = vpop.permute.xlu0 %332
    %v335 = vlaneseq
    %v336 = vshrl.u32 %v335, 7
    %v337 = vsub.s32 0, %v336
    %v338 = vrot.slane %v333, %v337
    %v340 = vsel %vm182, %v328, 0
    %342 = vmatprep.subr.mxu0 0.0
    %343 = vmatpush1.msra.mxu0 0.0
    %344 = vmatprep.subr.mxu0 0.0
    %345 = vmatpush1.msra.mxu0 0.0
    %346 = vmatprep.subr.mxu0 0.0
    %347 = vmatpush1.msra.mxu0 0.0
    %348 = vmatprep.subr.mxu0 0.0
    %349 = vmatpush1.msra.mxu0 0.0
    %350 = vmatprep.subr.mxu0 0.0
    %351 = vmatpush1.msra.mxu0 0.0
    %352 = vmatprep.subr.mxu0 0.0
    %353 = vmatpush1.msra.mxu0 0.0
    %354 = vmatprep.subr.mxu0 0.0
    %355 = vmatpush1.msra.mxu0 0.0
    %356 = vmatprep.subr.mxu0 0.0
    %357 = vmatpush1.msra.mxu0 0.0
    %358 = vmatprep.subr.mxu0 0.0
    %359 = vmatpush1.msra.mxu0 0.0
    %360 = vmatprep.subr.mxu0 0.0
    %361 = vmatpush1.msra.mxu0 0.0
    %362 = vmatprep.subr.mxu0 0.0
    %363 = vmatpush1.msra.mxu0 0.0
    %364 = vmatprep.subr.mxu0 0.0
    %365 = vmatpush1.msra.mxu0 0.0
    %366 = vmatprep.subr.mxu0 0.0
    %367 = vmatpush1.msra.mxu0 0.0
    %368 = vmatprep.subr.mxu0 0.0
    %369 = vmatpush1.msra.mxu0 0.0
    %370 = vmatprep.subr.mxu0 0.0
    %371 = vmatpush1.msra.mxu0 0.0
    %372 = vmatprep.subr.mxu0 0.0
    %373 = vmatpush1.msra.mxu0 %v327
    %374 = vmatprep.subr.mxu0 0.0
    %375 = vmatpush2.msra.mxu0 0.0
    %376 = vmatprep.subr.mxu0 0.0
    %377 = vmatpush2.msra.mxu0 0.0
    %378 = vmatprep.subr.mxu0 0.0
    %379 = vmatpush2.msra.mxu0 0.0
    %380 = vmatprep.subr.mxu0 0.0
    %381 = vmatpush2.msra.mxu0 0.0
    %382 = vmatprep.subr.mxu0 0.0
    %383 = vmatpush2.msra.mxu0 0.0
    %384 = vmatprep.subr.mxu0 0.0
    %385 = vmatpush2.msra.mxu0 0.0
    %386 = vmatprep.subr.mxu0 0.0
    %387 = vmatpush2.msra.mxu0 0.0
    %388 = vmatprep.subr.mxu0 0.0
    %389 = vmatpush2.msra.mxu0 0.0
    %390 = vmatprep.subr.mxu0 0.0
    %391 = vmatpush2.msra.mxu0 0.0
    %392 = vmatprep.subr.mxu0 0.0
    %393 = vmatpush2.msra.mxu0 0.0
    %394 = vmatprep.subr.mxu0 0.0
    %395 = vmatpush2.msra.mxu0 0.0
    %396 = vmatprep.subr.mxu0 0.0
    %397 = vmatpush2.msra.mxu0 0.0
    %398 = vmatprep.subr.mxu0 0.0
    %399 = vmatpush2.msra.mxu0 0.0
    %400 = vmatprep.subr.mxu0 0.0
    %401 = vmatpush2.msra.mxu0 0.0
    %402 = vmatprep.subr.mxu0 0.0
    %403 = vmatpush2.msra.mxu0 0.0
    %404 = vmatprep.subr.mxu0 0.0
    %405 = vmatpush2.msra.mxu0 0.0
    %406 = vmatprep.mubr.f32.mxu0 0.0
    %407 = vmatmul.mubr.f32.gmra.mxu0 %v340
    %v408 = vpop.f32.mrf.mxu0
    %v409 = vadd.f32 %v338, %v408
    %v410 = vpop.f32.mrf.mxu0
    %411 = vdwg.mxu0
    %412 = vst [vmem:[#allocation3] sm:$0x1] %v409
    // Predicated region
    $region30: #{tpu_custom_call.1} parent=1 // pred_check
      _
    $region31: #{tpu_custom_call.1} parent=1 // pred_check_branch
      %414 = sbr.rel (0) target = $region33
    $region32: #{tpu_custom_call.1} parent=1 // pred_region
      %s416 = ssub.s32 16, 16
      %417 = vsyncadd [#allocation4], %s416
      %s419 = sshll.u32 [#allocation3], 4
      %s420 = int_to_ptr.vmem [resolvable:$true] %s419
      %422 = dma.vmem_to_hbm [thread:$0]  %s420, 16, %s7, [#allocation4]
    $region33: #{tpu_custom_call.1} parent=1 // pred_fallthru
      _
    // Predicated region
    $region34: #{tpu_custom_call.1} parent=1 // pred_check
      _
    $region35: #{tpu_custom_call.1} parent=1 // pred_check_branch
      %424 = sbr.rel (0) target = $region37
    $region36: #{tpu_custom_call.1} parent=1 // pred_region
      %425 = dma.done [#allocation4], 16
    $region37: #{tpu_custom_call.1} parent=1 // pred_fallthru
      _
    %426 = vsyncpa [#allocation4], 1

</llo_original>
